<compile_context>
chip_gen: v7x
topology: tpu7x:2x2x1
jax: 0.10.0
libtpu: 0.0.40
codegen_flags: <defaults>
</compile_context>

<pallas_src>
import functools

import jax
import jax.numpy as jnp
from jax.experimental import pallas as pl
from jax.experimental.pallas import tpu as pltpu


def _contrastive_loss_kernel(x1_ref, x2_ref, label_ref, out_ref, acc_ref, *,
                             margin, eps, total_rows, block_rows):
    step = pl.program_id(0)

    @pl.when(step == 0)
    def _init():
        acc_ref[...] = jnp.zeros_like(acc_ref)

    x1 = x1_ref[...].astype(jnp.float32)          # (TB, D)
    x2 = x2_ref[...].astype(jnp.float32)          # (TB, D)
    lab = label_ref[...].astype(jnp.float32)      # (TB, 1)

    # F.pairwise_distance(x1, x2, p=2, eps=1e-6): ||x1 - x2 + eps||_2 over D.
    diff = x1 - x2 + eps
    d2 = jnp.sum(diff * diff, axis=-1, keepdims=True)   # (TB, 1)
    d = jnp.sqrt(d2)                                     # (TB, 1)

    # (1 - y) * d^2 + y * clamp(margin - d, 0)^2   (use d2 directly for pos term)
    per_row = (1.0 - lab) * d2 + lab * jnp.square(jnp.maximum(margin - d, 0.0))

    # Mask rows that only exist because of padding to a multiple of TB.
    row = step * block_rows + jax.lax.broadcasted_iota(jnp.int32, per_row.shape, 0)
    per_row = jnp.where(row < total_rows, per_row, 0.0)

    acc_ref[...] = acc_ref[...] + jnp.sum(per_row)

    @pl.when(step == pl.num_programs(0) - 1)
    def _finalize():
        out_ref[...] = acc_ref[...] * (1.0 / float(total_rows))


def _round_up(x, m):
    return ((x + m - 1) // m) * m


def contrastive_loss(output1, output2, label, *, margin=2.0, eps=1e-6,
                     block_rows=None):
    """JAX/Pallas equivalent of ContrastiveLoss.forward.

    output1, output2: (B, D) arrays (any float dtype; cast in-kernel)
    label:            (B,) or (B, 1) 0/1 labels
    returns: scalar float32 loss
    """
    output1 = jnp.asarray(output1)
    output2 = jnp.asarray(output2)
    B, D = output1.shape
    label = jnp.asarray(label).reshape(B, 1).astype(jnp.float32)

    # Tile rows: ~2 MiB per input tile (2 inputs x 2 pipeline buffers ~= 8 MiB),
    # capped at 1024 rows and rounded to the (8, 128) sublane constraint.
    itemsize = jnp.dtype(output1.dtype).itemsize
    if block_rows is None:
        tb = (2 * 1024 * 1024) // max(D * itemsize, 1)
        tb = max(8, min(1024, (tb // 8) * 8))
    else:
        tb = max(8, _round_up(int(block_rows), 8))
    tb = min(tb, _round_up(B, 8))

    # Pad the batch to a multiple of the tile; padded rows are masked in-kernel.
    b_pad = _round_up(B, tb)
    if b_pad != B:
        pad = b_pad - B
        output1 = jnp.pad(output1, ((0, pad), (0, 0)))
        output2 = jnp.pad(output2, ((0, pad), (0, 0)))
        label = jnp.pad(label, ((0, pad), (0, 0)))
    grid = b_pad // tb

    # TODO(synk): for very large D (>= 8K) add a second grid axis over D with a
    # per-row d2 accumulator to keep tiles small on v7x's 64 MiB VMEM.
    kernel = functools.partial(
        _contrastive_loss_kernel,
        margin=float(margin), eps=float(eps), total_rows=B, block_rows=tb)

    out = pl.pallas_call(
        kernel,
        out_shape=jax.ShapeDtypeStruct((1, 1), jnp.float32),
        grid=(grid,),
        in_specs=[
            pl.BlockSpec((tb, D), lambda i: (i, 0)),
            pl.BlockSpec((tb, D), lambda i: (i, 0)),
            pl.BlockSpec((tb, 1), lambda i: (i, 0)),
        ],
        out_specs=pl.BlockSpec((1, 1), lambda i: (0, 0)),
        scratch_shapes=[pltpu.VMEM((1, 1), jnp.float32)],
        compiler_params=pltpu.CompilerParams(
            dimension_semantics=("arbitrary",),   # batch axis carries accumulator
            vmem_limit_bytes=32 << 20,
        ),
    )(output1, output2, label)
    return out[0, 0]


def _reference_loss(output1, output2, label, margin=2.0, eps=1e-6):
    # pure-JAX reference mirroring the PyTorch semantics
    d = jnp.sqrt(jnp.sum((output1.astype(jnp.float32)
                          - output2.astype(jnp.float32) + eps) ** 2, axis=-1))
    return jnp.mean((1.0 - label) * d**2
                    + label * jnp.square(jnp.maximum(margin - d, 0.0)))


if __name__ == "__main__":
    key = jax.random.PRNGKey(0)
    k1, k2, k3 = jax.random.split(key, 3)

    B, D = 20, 32
    output1 = jax.random.normal(k1, (B, D), dtype=jnp.float32)
    output2 = jax.random.normal(k2, (B, D), dtype=jnp.float32)
    label = jax.random.bernoulli(k3, 0.5, (B,)).astype(jnp.float32)

    ref = _reference_loss(output1, output2, label)

    # Small forced tile: exercises grid=3 with padding + in-kernel row masking.
    loss_tiled = contrastive_loss(output1, output2, label, margin=2.0,
                                  block_rows=8)
    loss_tiled = jax.block_until_ready(loss_tiled)
    assert jnp.allclose(loss_tiled, ref, rtol=1e-5, atol=1e-5), (loss_tiled, ref)

    # Default (auto) tile size path.
    loss_auto = contrastive_loss(output1, output2, label, margin=2.0)
    loss_auto = jax.block_until_ready(loss_auto)
    assert jnp.allclose(loss_auto, ref, rtol=1e-5, atol=1e-5), (loss_auto, ref)

    print("KERNEL_OK")
</pallas_src>

<mosaic_0001>
module attributes {stable_mosaic.version = 11 : i64} {
  func.func @_contrastive_loss_kernel(%arg0: i32, %arg1: memref<8x32xf32, #tpu.memory_space<vmem>>, %arg2: memref<8x32xf32, #tpu.memory_space<vmem>>, %arg3: memref<8x1xf32, #tpu.memory_space<vmem>>, %arg4: memref<1x1xf32, #tpu.memory_space<vmem>>, %arg5: memref<1x1xf32, #tpu.memory_space<vmem>>) attributes {dimension_semantics = [#tpu.dimension_semantics<arbitrary>], iteration_bounds = array<i64: 3>, scalar_prefetch = 0 : i64, scratch_operands = 1 : i64, tpu.core_type = #tpu.core_type<tc>, window_params = [{transform_indices = @transform_0, window_bounds = array<i64: 8, 32>}, {transform_indices = @transform_1, window_bounds = array<i64: 8, 32>}, {transform_indices = @transform_2, window_bounds = array<i64: 8, 1>}, {pipeline_mode = #tpu.pipeline_mode<synchronous>, transform_indices = @transform_3, window_bounds = array<i64: 1, 1>}]} {
    %c0_i32 = arith.constant 0 : i32
    %0 = arith.cmpi eq, %arg0, %c0_i32 : i32
    %1 = arith.extui %0 : i1 to i32
    %c0_i32_0 = arith.constant 0 : i32
    %2 = arith.cmpi ne, %1, %c0_i32_0 : i32
    scf.if %2 {
      %cst_17 = arith.constant 0.000000e+00 : f32
      %42 = vector.broadcast %cst_17 : f32 to vector<1x1xf32>
      %c0_18 = arith.constant 0 : index
      %c0_19 = arith.constant 0 : index
      %43 = vector.load %arg5[%c0_18, %c0_19] : memref<1x1xf32, #tpu.memory_space<vmem>>, vector<1x1xf32>
      tpu.vector_store %arg5[%c0_18, %c0_19], %42 {strides = array<i32>} : memref<1x1xf32, #tpu.memory_space<vmem>>, vector<1x1xf32>,
    } else {
    }
    %c0 = arith.constant 0 : index
    %c0_1 = arith.constant 0 : index
    %3 = vector.load %arg1[%c0, %c0_1] : memref<8x32xf32, #tpu.memory_space<vmem>>, vector<8x32xf32>
    %c0_2 = arith.constant 0 : index
    %c0_3 = arith.constant 0 : index
    %4 = vector.load %arg2[%c0_2, %c0_3] : memref<8x32xf32, #tpu.memory_space<vmem>>, vector<8x32xf32>
    %c0_4 = arith.constant 0 : index
    %c0_5 = arith.constant 0 : index
    %5 = vector.load %arg3[%c0_4, %c0_5] : memref<8x1xf32, #tpu.memory_space<vmem>>, vector<8x1xf32>
    %6 = arith.subf %3, %4 : vector<8x32xf32>
    %cst = arith.constant 9.99999997E-7 : f32
    %7 = vector.broadcast %cst : f32 to vector<8x32xf32>
    %8 = arith.addf %6, %7 : vector<8x32xf32>
    %9 = arith.mulf %8, %8 : vector<8x32xf32>
    %cst_6 = arith.constant dense<0.000000e+00> : vector<8xf32>
    %10 = vector.multi_reduction <add>, %9, %cst_6 [1] : vector<8x32xf32> to vector<8xf32>
    %11 = vector.shape_cast %10 : vector<8xf32> to vector<8x1xf32>
    %12 = math.sqrt %11 : vector<8x1xf32>
    %cst_7 = arith.constant 1.000000e+00 : f32
    %13 = vector.broadcast %cst_7 : f32 to vector<8x1xf32>
    %14 = arith.subf %13, %5 : vector<8x1xf32>
    %15 = arith.mulf %14, %11 : vector<8x1xf32>
    %cst_8 = arith.constant 2.000000e+00 : f32
    %16 = vector.broadcast %cst_8 : f32 to vector<8x1xf32>
    %17 = arith.subf %16, %12 : vector<8x1xf32>
    %cst_9 = arith.constant 0.000000e+00 : f32
    %18 = vector.broadcast %cst_9 : f32 to vector<8x1xf32>
    %19 = arith.maximumf %17, %18 : vector<8x1xf32>
    %20 = arith.mulf %19, %19 : vector<8x1xf32>
    %21 = arith.mulf %5, %20 : vector<8x1xf32>
    %22 = arith.addf %15, %21 : vector<8x1xf32>
    %c8_i32 = arith.constant 8 : i32
    %23 = arith.muli %arg0, %c8_i32 : i32
    %24 = tpu.iota {dimensions = array<i32: 0>} : vector<8x1xi32>
    %25 = vector.broadcast %23 : i32 to vector<8x1xi32>
    %26 = arith.addi %25, %24 : vector<8x1xi32>
    %c20_i32 = arith.constant 20 : i32
    %27 = vector.broadcast %c20_i32 : i32 to vector<8x1xi32>
    %28 = arith.cmpi slt, %26, %27 : vector<8x1xi32>
    %cst_10 = arith.constant 0.000000e+00 : f32
    %29 = vector.broadcast %cst_10 : f32 to vector<8x1xf32>
    %30 = arith.select %28, %22, %29 : vector<8x1xi1>, vector<8x1xf32>
    %c0_11 = arith.constant 0 : index
    %c0_12 = arith.constant 0 : index
    %31 = vector.load %arg5[%c0_11, %c0_12] : memref<1x1xf32, #tpu.memory_space<vmem>>, vector<1x1xf32>
    %32 = vector.shape_cast %30 : vector<8x1xf32> to vector<1x8x1xf32>
    %cst_13 = arith.constant dense<0.000000e+00> : vector<1xf32>
    %33 = vector.multi_reduction <add>, %32, %cst_13 [1, 2] : vector<1x8x1xf32> to vector<1xf32>
    %34 = vector.shape_cast %33 : vector<1xf32> to vector<1x1x1xf32>
    %35 = vector.extract %34[0, 0, 0] : f32 from vector<1x1x1xf32>
    %36 = vector.broadcast %35 : f32 to vector<1x1xf32>
    %37 = arith.addf %31, %36 : vector<1x1xf32>
    %c0_14 = arith.constant 0 : index
    %c0_15 = arith.constant 0 : index
    %38 = vector.load %arg5[%c0_14, %c0_15] : memref<1x1xf32, #tpu.memory_space<vmem>>, vector<1x1xf32>
    tpu.vector_store %arg5[%c0_14, %c0_15], %37 {strides = array<i32>} : memref<1x1xf32, #tpu.memory_space<vmem>>, vector<1x1xf32>,
    %c2_i32 = arith.constant 2 : i32
    %39 = arith.cmpi eq, %arg0, %c2_i32 : i32
    %40 = arith.extui %39 : i1 to i32
    %c0_i32_16 = arith.constant 0 : i32
    %41 = arith.cmpi ne, %40, %c0_i32_16 : i32
    scf.if %41 {
      %c0_17 = arith.constant 0 : index
      %c0_18 = arith.constant 0 : index
      %42 = vector.load %arg5[%c0_17, %c0_18] : memref<1x1xf32, #tpu.memory_space<vmem>>, vector<1x1xf32>
      %cst_19 = arith.constant 5.000000e-02 : f32
      %43 = vector.broadcast %cst_19 : f32 to vector<1x1xf32>
      %44 = arith.mulf %42, %43 : vector<1x1xf32>
      %c0_20 = arith.constant 0 : index
      %c0_21 = arith.constant 0 : index
      %45 = vector.load %arg4[%c0_20, %c0_21] : memref<1x1xf32, #tpu.memory_space<vmem>>, vector<1x1xf32>
      tpu.vector_store %arg4[%c0_20, %c0_21], %44 {strides = array<i32>} : memref<1x1xf32, #tpu.memory_space<vmem>>, vector<1x1xf32>,
    } else {
    }
    return
  }
  func.func @transform_0(%arg0: i32) -> (i32, i32) {
    %c0_i32 = arith.constant 0 : i32
    %c0_i32_0 = arith.constant 0 : i32
    return %arg0, %c0_i32 : i32, i32
  }
  func.func @transform_1(%arg0: i32) -> (i32, i32) {
    %c0_i32 = arith.constant 0 : i32
    %c0_i32_0 = arith.constant 0 : i32
    return %arg0, %c0_i32 : i32, i32
  }
  func.func @transform_2(%arg0: i32) -> (i32, i32) {
    %c0_i32 = arith.constant 0 : i32
    %c0_i32_0 = arith.constant 0 : i32
    return %arg0, %c0_i32 : i32, i32
  }
  func.func @transform_3(%arg0: i32) -> (i32, i32) {
    %c0_i32 = arith.constant 0 : i32
    %c0_i32_0 = arith.constant 0 : i32
    %c0_i32_1 = arith.constant 0 : i32
    return %c0_i32, %c0_i32_0 : i32, i32
  }
}

</mosaic_0001>

<llo_original>
// kernel: tpu_custom_call.1
$region0: #{tpu_custom_call.1}
  #allocation0 [shape = 'u32[]', space=smem, size = 0x4, offset = 0x4, fixed_abs, tag = 'smem constant byte address 0x4 - core index']
  #allocation1 [shape = 'u32[144,128]{1,0:T(1,128)}', space=vmem, size = 0x12000, scoped, tag = 'internal scratch']
  #allocation2 [shape = 'f32[1,1]{1,0:T(1,128)}', space=vmem, size = 0x200, scoped, tag = 'scratch operand']
  %s0 = inlined_call_operand.vmem [shape: f32[24,32], index: 0, kind: input, shape index: {}]
  %s1 = inlined_call_operand.hbm [shape: f32[24,32], index: 1, kind: input, shape index: {}]
  %s2 = inlined_call_operand.vmem [shape: f32[24,1], index: 2, kind: input, shape index: {}]
  %s3 = inlined_call_operand.hbm [shape: f32[1,1], index: 3, kind: output, shape index: {}]
  %s4 = sld [smem:[#allocation0]]
  $region57: #{tpu_custom_call.1} parent=0
    _
  %s6 = ssub.s32 1, %s4
  %s7 = scalar_select 0, %s6, %s4
  $region1: #{tpu_custom_call.1} parent=0
    #allocation3 [shape = 'u8[8192]{0}', space=vmem, size = 0x2000, scoped, tag = 'input window, operand 1']
    #allocation4 [shape = 's32[2]{0}', space=sflag, size = 0x8, scoped, tag = 'scoped memory for tpu_custom_call.1']
    #allocation5 [shape = 's32[2]{0}', space=sflag, size = 0x8, scoped, tag = 'scoped memory for tpu_custom_call.1']
    #allocation6 [shape = 'u8[512]{0}', space=vmem, size = 0x400, scoped, tag = 'output window, operand 0, single buffered']
    %8 = vsyncpa [#allocation4], 0
    %s9 = scalar_lea.sflag [#allocation4], 1
    %10 = vsyncpa %s9, 0
    %11 = vsyncpa [#allocation5], 0
    loop: start=0, step=1, limit=5
    $region2: #{tpu_custom_call.1} parent=1 // loop_pre_header
      _
    $region3: #{tpu_custom_call.1} parent=1 // loop_header
      %s13 = sphi 0, %s17
      %p14 = scmp.ge.s32.totalorder %s13, 5
      %s23 = sphi 0, %s25
      %s26 = sphi 0, %s23
      %s27 = sphi 0, %s26
      %s43 = sphi 0, %s27
      %s49 = sphi 0, %s51
      %s52 = sphi 0, %s49
      %s53 = sphi 0, %s52
      %s69 = sphi 0, %s53
      %s75 = sphi 0, %s77
      %s78 = sphi 0, %s75
      %s79 = sphi 0, %s78
      %s95 = sphi 0, %s79
      %s99 = sphi 0, %s99
      %s101 = sphi 0, %s99
      %s102 = sphi 0, %s101
      %s116 = sphi 0, %s102
    $region4: #{tpu_custom_call.1} parent=1 // loop_header_branch
      %16 = sbr.rel (%p14) target = $region8
    $region5: #{tpu_custom_call.1} parent=1 // loop_body
      %s18 = ssub.s32 %s13, 1
      %s19 = ssub.s32 %s13, 2
      %s20 = sadd.s32 %s13, 1
      %s21 = ssub.s32 %s13, %s20
      %p22 = scmp.eq.s32.totalorder %s21, 0
      %s24 = sadd.s32 %s23, 1
      %s25 = scalar_select %p22, %s23, %s24
      %p28 = pneg %p22
      %p29 = scmp.eq.s32.totalorder %s13, 2
      %p30 = por %p28, %p29
      %p31 = scmp.ne.s32.totalorder %s23, %s26
      %p32 = scmp.eq.s32.totalorder %s13, 0
      %p33 = por %p31, %p32
      %p34 = scmp.ne.s32.totalorder %s23, %s26
      %p35 = scmp.eq.s32.totalorder %s18, 2
      %p36 = por %p34, %p35
      %p37 = scmp.ne.s32.totalorder %s26, %s27
      %p38 = scmp.eq.s32.totalorder %s18, 0
      %p39 = por %p37, %p38
      %p40 = scmp.ne.s32.totalorder %s26, %s27
      %p41 = scmp.eq.s32.totalorder %s19, 2
      %p42 = por %p40, %p41
      %p44 = scmp.ne.s32.totalorder %s27, %s43
      %p45 = scmp.eq.s32.totalorder %s19, 0
      %p46 = por %p44, %p45
      %s47 = ssub.s32 %s13, %s20
      %p48 = scmp.eq.s32.totalorder %s47, 0
      %s50 = sadd.s32 %s49, 1
      %s51 = scalar_select %p48, %s49, %s50
      %p54 = pneg %p48
      %p55 = scmp.eq.s32.totalorder %s13, 2
      %p56 = por %p54, %p55
      %p57 = scmp.ne.s32.totalorder %s49, %s52
      %p58 = scmp.eq.s32.totalorder %s13, 0
      %p59 = por %p57, %p58
      %p60 = scmp.ne.s32.totalorder %s49, %s52
      %p61 = scmp.eq.s32.totalorder %s18, 2
      %p62 = por %p60, %p61
      %p63 = scmp.ne.s32.totalorder %s52, %s53
      %p64 = scmp.eq.s32.totalorder %s18, 0
      %p65 = por %p63, %p64
      %p66 = scmp.ne.s32.totalorder %s52, %s53
      %p67 = scmp.eq.s32.totalorder %s19, 2
      %p68 = por %p66, %p67
      %p70 = scmp.ne.s32.totalorder %s53, %s69
      %p71 = scmp.eq.s32.totalorder %s19, 0
      %p72 = por %p70, %p71
      %s73 = ssub.s32 %s13, %s20
      %p74 = scmp.eq.s32.totalorder %s73, 0
      %s76 = sadd.s32 %s75, 1
      %s77 = scalar_select %p74, %s75, %s76
      %p80 = pneg %p74
      %p81 = scmp.eq.s32.totalorder %s13, 2
      %p82 = por %p80, %p81
      %p83 = scmp.ne.s32.totalorder %s75, %s78
      %p84 = scmp.eq.s32.totalorder %s13, 0
      %p85 = por %p83, %p84
      %p86 = scmp.ne.s32.totalorder %s75, %s78
      %p87 = scmp.eq.s32.totalorder %s18, 2
      %p88 = por %p86, %p87
      %p89 = scmp.ne.s32.totalorder %s78, %s79
      %p90 = scmp.eq.s32.totalorder %s18, 0
      %p91 = por %p89, %p90
      %p92 = scmp.ne.s32.totalorder %s78, %s79
      %p93 = scmp.eq.s32.totalorder %s19, 2
      %p94 = por %p92, %p93
      %p96 = scmp.ne.s32.totalorder %s79, %s95
      %p97 = scmp.eq.s32.totalorder %s19, 0
      %p98 = por %p96, %p97
      %s100 = sadd.s32 %s99, 1
      %p103 = scmp.eq.s32.totalorder %s13, 2
      %p104 = scmp.ne.s32.totalorder %s99, %s101
      %p105 = scmp.eq.s32.totalorder %s13, 0
      %p106 = por %p104, %p105
      %p107 = scmp.ne.s32.totalorder %s99, %s101
      %p108 = scmp.eq.s32.totalorder %s18, 2
      %p109 = por %p107, %p108
      %p110 = scmp.ne.s32.totalorder %s101, %s102
      %p111 = scmp.eq.s32.totalorder %s18, 0
      %p112 = por %p110, %p111
      %p113 = scmp.ne.s32.totalorder %s101, %s102
      %p114 = scmp.eq.s32.totalorder %s19, 2
      %p115 = por %p113, %p114
      %p117 = scmp.ne.s32.totalorder %s102, %s116
      %p118 = scmp.eq.s32.totalorder %s19, 0
      %p119 = por %p117, %p118
      %p120 = scmp.le.s32.totalorder 1, %s13
      %p121 = scmp.lt.s32.totalorder %s13, 4
      %p122 = pnand %p120, %p121
      %p123 = pneg %p122
      // Predicated region
      $region9: #{tpu_custom_call.1} parent=5 // pred_check
        _
      $region10: #{tpu_custom_call.1} parent=5 // pred_check_branch
        %125 = sbr.rel (%p122) target = $region12
      $region11: #{tpu_custom_call.1} parent=5 // pred_region
        %s126 = ssub.s32 %s13, 1
      $region12: #{tpu_custom_call.1} parent=5 // pred_fallthru
        _
      %p127 = scmp.lt.s32.totalorder %s13, 3
      // Predicated region
      $region13: #{tpu_custom_call.1} parent=5 // pred_check
        %p128 = pneg %p127
      $region14: #{tpu_custom_call.1} parent=5 // pred_check_branch
        %130 = sbr.rel (%p128) target = $region16
      $region15: #{tpu_custom_call.1} parent=5 // pred_region
        // Predicated region
        $region17: #{tpu_custom_call.1} parent=15 // pred_check
          %p131 = pneg %p33
        $region18: #{tpu_custom_call.1} parent=15 // pred_check_branch
          %133 = sbr.rel (%p131) target = $region20
        $region19: #{tpu_custom_call.1} parent=15 // pred_region
          %p134 = scmp.lt.s32.totalorder %s13, 2
          %s135 = scalar_select %p134, %s13, 2
          %s136 = smul.addr %s135, 8
          %s137 = scalar_lea.vmem %s0, %s136
        $region20: #{tpu_custom_call.1} parent=15 // pred_fallthru
          _
        // Predicated region
        $region21: #{tpu_custom_call.1} parent=15 // pred_check
          %p138 = pneg %p59
        $region22: #{tpu_custom_call.1} parent=15 // pred_check_branch
          %140 = sbr.rel (%p138) target = $region24
        $region23: #{tpu_custom_call.1} parent=15 // pred_region
          %s141 = sand.u32 %s49, 1
          %s142 = scalar_lea.sflag [#allocation4], %s141
          %s143 = sand.u32 %s49, 1
          %s144 = smul.addr %s143, 8
          %s145 = scalar_lea.vmem [#allocation3], %s144
          %s147 = ssub.s32 128, 128
          %148 = vsyncadd %s142, %s147
          %s149 = smul.addr %s13, 128
          %s150 = scalar_lea.hbm %s1, %s149
          %s152 = sshll.u32 %s145, 4
          %s153 = int_to_ptr.vmem [resolvable:$true] %s152
          %155 = dma.hbm_to_vmem [thread:$0]  %s150, 128, %s153, %s142
        $region24: #{tpu_custom_call.1} parent=15 // pred_fallthru
          _
        // Predicated region
        $region25: #{tpu_custom_call.1} parent=15 // pred_check
          %p156 = pneg %p85
        $region26: #{tpu_custom_call.1} parent=15 // pred_check_branch
          %158 = sbr.rel (%p156) target = $region28
        $region27: #{tpu_custom_call.1} parent=15 // pred_region
          %p159 = scmp.lt.s32.totalorder %s13, 2
          %s160 = scalar_select %p159, %s13, 2
          %s161 = smul.addr %s160, 8
          %s162 = scalar_lea.vmem %s2, %s161
        $region28: #{tpu_custom_call.1} parent=15 // pred_fallthru
          _
      $region16: #{tpu_custom_call.1} parent=5 // pred_fallthru
        _
      %p163 = scmp.le.s32.totalorder 1, %s13
      %p164 = scmp.lt.s32.totalorder %s13, 4
      %p165 = pnand %p163, %p164
      %p166 = pneg %p165
      // Predicated region
      $region29: #{tpu_custom_call.1} parent=5 // pred_check
        _
      $region30: #{tpu_custom_call.1} parent=5 // pred_check_branch
        %168 = sbr.rel (%p165) target = $region32
      $region31: #{tpu_custom_call.1} parent=5 // pred_region
        %s169 = ssub.s32 %s13, 1
        %s170 = sand.u32 %s52, 1
        %s171 = scalar_lea.sflag [#allocation4], %s170
        %s172 = sand.u32 %s52, 1
        %s173 = smul.addr %s172, 8
        %s174 = scalar_lea.vmem [#allocation3], %s173
        // Predicated region
        $region33: #{tpu_custom_call.1} parent=31 // pred_check
          %p175 = pneg %p65
        $region34: #{tpu_custom_call.1} parent=31 // pred_check_branch
          %177 = sbr.rel (%p175) target = $region36
        $region35: #{tpu_custom_call.1} parent=31 // pred_region
          %178 = dma.done %s171, 128
        $region36: #{tpu_custom_call.1} parent=31 // pred_fallthru
          _
        %p179 = scmp.lt.s32.totalorder %s18, 2
        %s180 = scalar_select %p179, %s18, 2
        %s181 = smul.addr %s180, 8
        %s182 = scalar_lea.vmem %s0, %s181
        %p183 = pneg %p39
        %p184 = pneg %p36
        %s185 = sand.u32 %s52, 1
        %s186 = scalar_lea.sflag [#allocation4], %s185
        %s187 = sand.u32 %s52, 1
        %s188 = smul.addr %s187, 8
        %s189 = scalar_lea.vmem [#allocation3], %s188
        %p190 = pneg %p65
        %p191 = pneg %p62
        %p192 = scmp.lt.s32.totalorder %s18, 2
        %s193 = scalar_select %p192, %s18, 2
        %s194 = smul.addr %s193, 8
        %s195 = scalar_lea.vmem %s2, %s194
        %p196 = pneg %p91
        %p197 = pneg %p88
        %p198 = pneg %p112
        %p199 = pneg %p109
        %p200 = scmp.lt.s32.totalorder %s18, 2
        %s201 = scalar_select %p200, %s18, 2
        %s202 = smul.addr %s201, 8
        %s203 = scalar_lea.vmem %s0, %s202
        %p204 = scmp.lt.s32.totalorder %s18, 2
        %s205 = scalar_select %p204, %s18, 2
        %s206 = smul.addr %s205, 8
        %s207 = scalar_lea.vmem %s2, %s206
        %p208 = scmp.eq.s32.totalorder %s18, 0
        // Predicated region
        $region37: #{tpu_custom_call.1} parent=31 // pred_check
          %p209 = pneg %p208
        $region38: #{tpu_custom_call.1} parent=31 // pred_check_branch
          %211 = sbr.rel (%p209) target = $region40
        $region39: #{tpu_custom_call.1} parent=31 // pred_region
          %vm212 = vcmask 0
          %213 = vst.msk [vmem:[#allocation2] sm:$0x1] %vm212, 0.0
        $region40: #{tpu_custom_call.1} parent=31 // pred_fallthru
          _
        %v214 = vld [vmem:[%s203] sm:$0xff]
        %v215 = vld [vmem:[%s174] sm:$0xff]
        %v216 = vld [vmem:[%s207] sm:$0xff]
        %v217 = vsub.f32 %v214, %v215
        %v218 = vadd.f32 %v217, 1e-06
        %v219 = vmul.f32 %v218, %v218
        %vm220 = vcmask 261120
        %v221 = vsel %vm220, %v219, 0.0
        %222 = vadd.xlane.f32.xlu0 %v221
        %v223 = vpop.xlane.xlu0 %222
        %v224 = vrsqrt.pop %v223
        %v225 = vmul.f32 %v223, %v224
        %vm226 = vcmp.eq.f32.partialorder %v223, inf
        %v227 = vsel %vm226, %v223, %v225
        %vm228 = vcmp.eq.f32.partialorder %v223, 0.0
        %v229 = vand.u32 %v223, 2147483648
        %v230 = vsel %vm228, %v229, %v227
        %v231 = vsub.f32 1.0, %v216
        %v232 = vmul.f32 %v231, %v223
        %v233 = vsub.f32 2.0, %v230
        %v234 = vmax.f32 %v233, 0.0
        %v235 = vmul.f32 %v234, %v234
        %v236 = vmul.f32 %v216, %v235
        %v237 = vadd.f32 %v232, %v236
        %s238 = smul.u32 %s18, 8
        %v239 = vlaneseq
        %v240 = vshrl.u32 %v239, 7
        %v241 = vstv %s238
        %v242 = vadd.s32 %v241, %v240
        %vm243 = vcmp.lt.s32.totalorder %v242, 20
        %v244 = vsel %vm243, %v237, 0.0
        %v245 = vld [vmem:[#allocation2] sm:$0x1]
        %vm246 = vcmask 7168
        %v247 = vsel %vm246, %v244, 0.0
        %248 = vadd.xlane.f32.xlu0 %v247
        %v249 = vpop.xlane.xlu0 %248
        %v250 = vrot.slane %v249, 4
        %v251 = vadd.f32 %v249, %v250
        %v252 = vrot.slane %v251, 2
        %v253 = vadd.f32 %v251, %v252
        %v254 = vrot.slane %v253, 1
        %v255 = vadd.f32 %v253, %v254
        %s256 = vtos %v255
        %v257 = vstv %s256
        %v258 = vadd.f32 %v245, %v257
        %vm259 = vcmask 0
        %260 = vst.msk [vmem:[#allocation2] sm:$0x1] %vm259, %v258
        %p261 = scmp.eq.s32.totalorder %s18, 2
        // Predicated region
        $region41: #{tpu_custom_call.1} parent=31 // pred_check
          %p262 = pneg %p261
        $region42: #{tpu_custom_call.1} parent=31 // pred_check_branch
          %264 = sbr.rel (%p262) target = $region44
        $region43: #{tpu_custom_call.1} parent=31 // pred_region
          %v265 = vld [vmem:[#allocation2] sm:$0x1]
          %v266 = vmul.f32 %v265, 0.05
          %267 = vst.msk [vmem:[#allocation6] sm:$0x1] %vm259, %v266
        $region44: #{tpu_custom_call.1} parent=31 // pred_fallthru
          _
        // Predicated region
        $region45: #{tpu_custom_call.1} parent=31 // pred_check
          %p268 = pneg %p109
        $region46: #{tpu_custom_call.1} parent=31 // pred_check_branch
          %270 = sbr.rel (%p268) target = $region48
        $region47: #{tpu_custom_call.1} parent=31 // pred_region
          %s272 = ssub.s32 16, 16
          %273 = vsyncadd [#allocation5], %s272
          %s275 = sshll.u32 [#allocation6], 4
          %s276 = int_to_ptr.vmem [resolvable:$true] %s275
          %278 = dma.vmem_to_hbm [thread:$0]  %s276, 16, %s3, [#allocation5]
        $region48: #{tpu_custom_call.1} parent=31 // pred_fallthru
          _
        // Predicated region
        $region49: #{tpu_custom_call.1} parent=31 // pred_check
          %p279 = pneg %p109
        $region50: #{tpu_custom_call.1} parent=31 // pred_check_branch
          %281 = sbr.rel (%p279) target = $region52
        $region51: #{tpu_custom_call.1} parent=31 // pred_region
          %282 = dma.done [#allocation5], 16
        $region52: #{tpu_custom_call.1} parent=31 // pred_fallthru
          _
      $region32: #{tpu_custom_call.1} parent=5 // pred_fallthru
        _
      %p283 = scmp.le.s32.totalorder 2, %s13
      // Predicated region
      $region53: #{tpu_custom_call.1} parent=5 // pred_check
        %p284 = pneg %p283
      $region54: #{tpu_custom_call.1} parent=5 // pred_check_branch
        %286 = sbr.rel (%p284) target = $region56
      $region55: #{tpu_custom_call.1} parent=5 // pred_region
        %s287 = ssub.s32 %s13, 2
      $region56: #{tpu_custom_call.1} parent=5 // pred_fallthru
        _
    $region6: #{tpu_custom_call.1} parent=1 // loop_footer
      %s17 = sadd.s32 1, %s13
    $region7: #{tpu_custom_call.1} parent=1 // loop_footer_branch
      %12 = sbr.rel target = $region3
    $region8: #{tpu_custom_call.1} parent=1 // loop_exit
      _
    %288 = vsyncpa [#allocation4], 1
    %s289 = scalar_lea.sflag [#allocation4], 1
    %290 = vsyncpa %s289, 1
    %291 = vsyncpa [#allocation5], 1
    %s292 = scalar_lea.sflag [#allocation5], 1
    %293 = vsyncpa %s292, 1

</llo_original>
